<compile_context>
chip_gen: v6e
topology: v6e:2x2x1
jax: 0.10.0
libtpu: 0.0.40
codegen_flags: <defaults>
</compile_context>

<pallas_src>
import functools

import jax
import jax.numpy as jnp
from jax import lax
from jax.experimental import pallas as pl
from jax.experimental.pallas import tpu as pltpu


# ----------------------------------------------------------------------------
# Kernel 1: row-tiled Q/K/V projection (three lane-dense (D, D) matmuls).
# ----------------------------------------------------------------------------
def _qkv_proj_kernel(x_ref, wq_ref, wk_ref, wv_ref, bq_ref, bk_ref, bv_ref,
                     q_ref, k_ref, v_ref, *, compute_dtype):
    # x_ref: (TR, D) rows of the flattened (B*S, D) input.
    # w*_ref: (D, D) pre-transposed weights (y = x @ W^T + b), already in
    #         compute_dtype (cast hoisted to prepare_params).
    # b*_ref: (1, D) f32 biases.
    x = x_ref[...].astype(compute_dtype)

    q = jnp.dot(x, wq_ref[...], preferred_element_type=jnp.float32) + bq_ref[...]
    k = jnp.dot(x, wk_ref[...], preferred_element_type=jnp.float32) + bk_ref[...]
    v = jnp.dot(x, wv_ref[...], preferred_element_type=jnp.float32) + bv_ref[...]

    q_ref[...] = q.astype(q_ref.dtype)
    k_ref[...] = k.astype(k_ref.dtype)
    v_ref[...] = v.astype(v_ref.dtype)


# ----------------------------------------------------------------------------
# Kernel 2: flash attention with online softmax (deferred normalization).
# ----------------------------------------------------------------------------
def _flash_attn_kernel(q_ref, k_ref, v_ref, o_ref, m_sc, l_sc, acc_sc,
                       *, compute_dtype, approx_recip):
    ki = pl.program_id(2)

    @pl.when(ki == 0)
    def _():
        m_sc[...] = jnp.full_like(m_sc, -jnp.inf)
        l_sc[...] = jnp.zeros_like(l_sc)
        acc_sc[...] = jnp.zeros_like(acc_sc)

    q = q_ref[0].astype(compute_dtype)          # (TQ, D)
    k = k_ref[0].astype(compute_dtype)          # (TKV, D)
    v = v_ref[0].astype(compute_dtype)          # (TKV, D)

    # scores = q @ k^T: contract feature axes directly (no in-kernel
    # transpose), f32 accumulation.  NOTE: NO 1/sqrt(d) scaling — matches the
    # PyTorch reference exactly.
    s = lax.dot_general(q, k, (((1,), (1,)), ((), ())),
                        preferred_element_type=jnp.float32)      # (TQ, TKV)

    # Online softmax update (all elementwise math stays in f32).
    m_prev = m_sc[...]
    m_new = jnp.maximum(m_prev, jnp.max(s, axis=-1, keepdims=True))
    alpha = jnp.exp(m_prev - m_new)                              # (TQ, 1)
    p = jnp.exp(s - m_new)                                       # (TQ, TKV) f32

    l_sc[...] = alpha * l_sc[...] + jnp.sum(p, axis=-1, keepdims=True)
    pv = jnp.dot(p.astype(compute_dtype), v,
                 preferred_element_type=jnp.float32)             # (TQ, D)
    acc_sc[...] = alpha * acc_sc[...] + pv
    m_sc[...] = m_new

    # Deferred normalization: one reciprocal + (TQ, D) scale at the end.
    @pl.when(ki == pl.num_programs(2) - 1)
    def _():
        inv_l = pl.reciprocal(l_sc[...], approx=approx_recip)
        o_ref[0] = (acc_sc[...] * inv_l).astype(o_ref.dtype)


# ----------------------------------------------------------------------------
# Wrapper.
# ----------------------------------------------------------------------------
def _pick_tile(n, preferred=256):
    """Largest of {preferred, 256, 128} dividing n, else the full extent.

    128/256 are multiples of both the f32 (8) and bf16 (16) sublane packing
    and of the MXU native dims (128 on v5e, 256 on v6e/v7x); a full-extent
    block is always layout-legal for small shapes.
    """
    for t in sorted({preferred, 256, 128}, reverse=True):
        if n >= t and n % t == 0:
            return t
    return n


def prepare_params(wq, wk, wv, bq, bk, bv, compute_dtype=jnp.bfloat16):
    """Hoisted (once-per-model) weight prep: transpose + cast outside the
    per-call path.  nn.Linear stores W as (out, in); y = x @ W^T + b."""
    d = wq.shape[0]
    return (jnp.asarray(wq.T, compute_dtype),
            jnp.asarray(wk.T, compute_dtype),
            jnp.asarray(wv.T, compute_dtype),
            jnp.asarray(bq, jnp.float32).reshape(1, d),
            jnp.asarray(bk, jnp.float32).reshape(1, d),
            jnp.asarray(bv, jnp.float32).reshape(1, d))


@functools.partial(jax.jit, static_argnames=("compute_dtype",))
def self_attention(x, wqT, wkT, wvT, bq, bk, bv, compute_dtype=jnp.bfloat16):
    B, S, D = x.shape
    rows = B * S

    TR = _pick_tile(rows, 256)     # projection row tile
    TQ = _pick_tile(S, 256)        # flash q tile   (use 128 if tuning for v5e)
    TKV = _pick_tile(S, 256)       # flash kv tile

    qkv_dtype = compute_dtype      # store q/k/v in compute dtype (halves HBM
                                   # traffic on the bf16 path)

    # ---------------- Q/K/V projection ----------------
    # Weights stay resident per step; for very large D on v7x (64 MiB VMEM)
    # the 3*D*D weight footprint should additionally be tiled along D with an
    # extra grid axis — not needed at these sizes.
    x2 = x.reshape(rows, D)
    proj_kernel = functools.partial(_qkv_proj_kernel, compute_dtype=compute_dtype)

    q2, k2, v2 = pl.pallas_call(
        proj_kernel,
        out_shape=(jax.ShapeDtypeStruct((rows, D), qkv_dtype),
                   jax.ShapeDtypeStruct((rows, D), qkv_dtype),
                   jax.ShapeDtypeStruct((rows, D), qkv_dtype)),
        grid_spec=pltpu.PrefetchScalarGridSpec(
            num_scalar_prefetch=0,
            grid=(rows // TR,),
            in_specs=[
                pl.BlockSpec((TR, D), lambda i: (i, 0)),   # x rows
                pl.BlockSpec((D, D), lambda i: (0, 0)),    # Wq^T (resident)
                pl.BlockSpec((D, D), lambda i: (0, 0)),    # Wk^T (resident)
                pl.BlockSpec((D, D), lambda i: (0, 0)),    # Wv^T (resident)
                pl.BlockSpec((1, D), lambda i: (0, 0)),    # bq
                pl.BlockSpec((1, D), lambda i: (0, 0)),    # bk
                pl.BlockSpec((1, D), lambda i: (0, 0)),    # bv
            ],
            out_specs=[
                pl.BlockSpec((TR, D), lambda i: (i, 0)),
                pl.BlockSpec((TR, D), lambda i: (i, 0)),
                pl.BlockSpec((TR, D), lambda i: (i, 0)),
            ],
        ),
        compiler_params=pltpu.CompilerParams(
            dimension_semantics=("parallel",)),
    )(x2, wqT, wkT, wvT, bq, bk, bv)

    q = q2.reshape(B, S, D)
    k = k2.reshape(B, S, D)
    v = v2.reshape(B, S, D)

    # ---------------- Flash attention ----------------
    attn_kernel = functools.partial(
        _flash_attn_kernel,
        compute_dtype=compute_dtype,
        approx_recip=(compute_dtype == jnp.bfloat16))

    out = pl.pallas_call(
        attn_kernel,
        out_shape=jax.ShapeDtypeStruct((B, S, D), x.dtype),
        grid_spec=pltpu.PrefetchScalarGridSpec(
            num_scalar_prefetch=0,
            grid=(B, S // TQ, S // TKV),
            in_specs=[
                pl.BlockSpec((1, TQ, D), lambda b, qi, ki: (b, qi, 0)),
                pl.BlockSpec((1, TKV, D), lambda b, qi, ki: (b, ki, 0)),
                pl.BlockSpec((1, TKV, D), lambda b, qi, ki: (b, ki, 0)),
            ],
            out_specs=pl.BlockSpec((1, TQ, D), lambda b, qi, ki: (b, qi, 0)),
            scratch_shapes=[
                pltpu.VMEM((TQ, 1), jnp.float32),   # running max m
                pltpu.VMEM((TQ, 1), jnp.float32),   # running denom l
                pltpu.VMEM((TQ, D), jnp.float32),   # output accumulator
            ],
        ),
        compiler_params=pltpu.CompilerParams(
            dimension_semantics=("parallel", "parallel", "arbitrary")),
    )(q, k, v)

    return out


# ----------------------------------------------------------------------------
# Pure-JAX reference (mirrors the PyTorch module, incl. no 1/sqrt(d) scaling).
# ----------------------------------------------------------------------------
def _reference(x, wq, wk, wv, bq, bk, bv):
    q = x @ wq.T + bq
    k = x @ wk.T + bk
    v = x @ wv.T + bv
    s = jnp.einsum("bqd,bkd->bqk", q, k)
    p = jax.nn.softmax(s, axis=-1)
    return jnp.einsum("bqk,bkd->bqd", p, v)


if __name__ == "__main__":
    B, S, D = 2, 8, 32
    key = jax.random.PRNGKey(0)
    kx, kq, kk, kv, kbq, kbk, kbv = jax.random.split(key, 7)

    x = jax.random.normal(kx, (B, S, D), dtype=jnp.float32)

    # Deterministic init, mimicking nn.Linear's U(-1/sqrt(in), 1/sqrt(in)).
    lim = 1.0 / (D ** 0.5)
    wq = jax.random.uniform(kq, (D, D), jnp.float32, -lim, lim)
    wk = jax.random.uniform(kk, (D, D), jnp.float32, -lim, lim)
    wv = jax.random.uniform(kv, (D, D), jnp.float32, -lim, lim)
    bq = jax.random.uniform(kbq, (D,), jnp.float32, -lim, lim)
    bk = jax.random.uniform(kbk, (D,), jnp.float32, -lim, lim)
    bv = jax.random.uniform(kbv, (D,), jnp.float32, -lim, lim)

    ref = _reference(x, wq, wk, wv, bq, bk, bv)

    # 1) Exact-semantics check: f32 compute path (approx=False reciprocal).
    p32 = prepare_params(wq, wk, wv, bq, bk, bv, compute_dtype=jnp.float32)
    out_f32 = self_attention(x, *p32, compute_dtype=jnp.float32)
    jax.block_until_ready(out_f32)
    assert out_f32.shape == (B, S, D)
    assert jnp.allclose(out_f32, ref, atol=1e-4, rtol=1e-4), "f32 path mismatch"

    # 2) Fast path: bf16 MXU operands, f32 accumulation / softmax.  Loose
    #    bound — catches structural bugs only; exactness is proven by (1).
    pbf = prepare_params(wq, wk, wv, bq, bk, bv, compute_dtype=jnp.bfloat16)
    out_bf16 = self_attention(x, *pbf, compute_dtype=jnp.bfloat16)
    jax.block_until_ready(out_bf16)
    assert out_bf16.shape == (B, S, D)
    assert bool(jnp.all(jnp.isfinite(out_bf16)))
    max_err = float(jnp.max(jnp.abs(out_bf16 - ref)))
    assert max_err < 2.5e-1, f"bf16 path max abs error too large: {max_err}"

    print("KERNEL_OK")
</pallas_src>

<mosaic_0001>
module attributes {stable_mosaic.version = 11 : i64} {
  func.func @_qkv_proj_kernel(%arg0: i32, %arg1: memref<16x32xf32, #tpu.memory_space<vmem>>, %arg2: memref<32x32xf32, #tpu.memory_space<vmem>>, %arg3: memref<32x32xf32, #tpu.memory_space<vmem>>, %arg4: memref<32x32xf32, #tpu.memory_space<vmem>>, %arg5: memref<1x32xf32, #tpu.memory_space<vmem>>, %arg6: memref<1x32xf32, #tpu.memory_space<vmem>>, %arg7: memref<1x32xf32, #tpu.memory_space<vmem>>, %arg8: memref<16x32xf32, #tpu.memory_space<vmem>>, %arg9: memref<16x32xf32, #tpu.memory_space<vmem>>, %arg10: memref<16x32xf32, #tpu.memory_space<vmem>>) attributes {dimension_semantics = [#tpu.dimension_semantics<parallel>], iteration_bounds = array<i64: 1>, scalar_prefetch = 0 : i64, scratch_operands = 0 : i64, tpu.core_type = #tpu.core_type<tc>, window_params = [{transform_indices = @transform_0, window_bounds = array<i64: 16, 32>}, {pipeline_mode = #tpu.pipeline_mode<synchronous>, transform_indices = @transform_1, window_bounds = array<i64: 32, 32>}, {pipeline_mode = #tpu.pipeline_mode<synchronous>, transform_indices = @transform_2, window_bounds = array<i64: 32, 32>}, {pipeline_mode = #tpu.pipeline_mode<synchronous>, transform_indices = @transform_3, window_bounds = array<i64: 32, 32>}, {pipeline_mode = #tpu.pipeline_mode<synchronous>, transform_indices = @transform_4, window_bounds = array<i64: 1, 32>}, {pipeline_mode = #tpu.pipeline_mode<synchronous>, transform_indices = @transform_5, window_bounds = array<i64: 1, 32>}, {pipeline_mode = #tpu.pipeline_mode<synchronous>, transform_indices = @transform_6, window_bounds = array<i64: 1, 32>}, {transform_indices = @transform_7, window_bounds = array<i64: 16, 32>}, {transform_indices = @transform_8, window_bounds = array<i64: 16, 32>}, {transform_indices = @transform_9, window_bounds = array<i64: 16, 32>}]} {
    %c0 = arith.constant 0 : index
    %c0_0 = arith.constant 0 : index
    %0 = vector.load %arg1[%c0, %c0_0] : memref<16x32xf32, #tpu.memory_space<vmem>>, vector<16x32xf32>
    %c0_1 = arith.constant 0 : index
    %c0_2 = arith.constant 0 : index
    %1 = vector.load %arg2[%c0_1, %c0_2] : memref<32x32xf32, #tpu.memory_space<vmem>>, vector<32x32xf32>
    %cst = arith.constant dense<0.000000e+00> : vector<16x32xf32>
    %2 = tpu.matmul %0, %1, %cst {dimension_numbers = #tpu.dot_dimension_numbers<[1], [0], [0], [1], [0, 0, 1, 1], [], []>} : vector<16x32xf32>, vector<32x32xf32>, vector<16x32xf32> -> vector<16x32xf32>
    %c0_3 = arith.constant 0 : index
    %c0_4 = arith.constant 0 : index
    %3 = vector.load %arg5[%c0_3, %c0_4] : memref<1x32xf32, #tpu.memory_space<vmem>>, vector<1x32xf32>
    %4 = vector.broadcast %3 : vector<1x32xf32> to vector<16x32xf32>
    %5 = arith.addf %2, %4 : vector<16x32xf32>
    %c0_5 = arith.constant 0 : index
    %c0_6 = arith.constant 0 : index
    %6 = vector.load %arg3[%c0_5, %c0_6] : memref<32x32xf32, #tpu.memory_space<vmem>>, vector<32x32xf32>
    %cst_7 = arith.constant dense<0.000000e+00> : vector<16x32xf32>
    %7 = tpu.matmul %0, %6, %cst_7 {dimension_numbers = #tpu.dot_dimension_numbers<[1], [0], [0], [1], [0, 0, 1, 1], [], []>} : vector<16x32xf32>, vector<32x32xf32>, vector<16x32xf32> -> vector<16x32xf32>
    %c0_8 = arith.constant 0 : index
    %c0_9 = arith.constant 0 : index
    %8 = vector.load %arg6[%c0_8, %c0_9] : memref<1x32xf32, #tpu.memory_space<vmem>>, vector<1x32xf32>
    %9 = vector.broadcast %8 : vector<1x32xf32> to vector<16x32xf32>
    %10 = arith.addf %7, %9 : vector<16x32xf32>
    %c0_10 = arith.constant 0 : index
    %c0_11 = arith.constant 0 : index
    %11 = vector.load %arg4[%c0_10, %c0_11] : memref<32x32xf32, #tpu.memory_space<vmem>>, vector<32x32xf32>
    %cst_12 = arith.constant dense<0.000000e+00> : vector<16x32xf32>
    %12 = tpu.matmul %0, %11, %cst_12 {dimension_numbers = #tpu.dot_dimension_numbers<[1], [0], [0], [1], [0, 0, 1, 1], [], []>} : vector<16x32xf32>, vector<32x32xf32>, vector<16x32xf32> -> vector<16x32xf32>
    %c0_13 = arith.constant 0 : index
    %c0_14 = arith.constant 0 : index
    %13 = vector.load %arg7[%c0_13, %c0_14] : memref<1x32xf32, #tpu.memory_space<vmem>>, vector<1x32xf32>
    %14 = vector.broadcast %13 : vector<1x32xf32> to vector<16x32xf32>
    %15 = arith.addf %12, %14 : vector<16x32xf32>
    %c0_15 = arith.constant 0 : index
    %c0_16 = arith.constant 0 : index
    %16 = vector.load %arg8[%c0_15, %c0_16] : memref<16x32xf32, #tpu.memory_space<vmem>>, vector<16x32xf32>
    tpu.vector_store %arg8[%c0_15, %c0_16], %5 {strides = array<i32>} : memref<16x32xf32, #tpu.memory_space<vmem>>, vector<16x32xf32>,
    %c0_17 = arith.constant 0 : index
    %c0_18 = arith.constant 0 : index
    %17 = vector.load %arg9[%c0_17, %c0_18] : memref<16x32xf32, #tpu.memory_space<vmem>>, vector<16x32xf32>
    tpu.vector_store %arg9[%c0_17, %c0_18], %10 {strides = array<i32>} : memref<16x32xf32, #tpu.memory_space<vmem>>, vector<16x32xf32>,
    %c0_19 = arith.constant 0 : index
    %c0_20 = arith.constant 0 : index
    %18 = vector.load %arg10[%c0_19, %c0_20] : memref<16x32xf32, #tpu.memory_space<vmem>>, vector<16x32xf32>
    tpu.vector_store %arg10[%c0_19, %c0_20], %15 {strides = array<i32>} : memref<16x32xf32, #tpu.memory_space<vmem>>, vector<16x32xf32>,
    return
  }
  func.func @transform_0(%arg0: i32) -> (i32, i32) {
    %c0_i32 = arith.constant 0 : i32
    %c0_i32_0 = arith.constant 0 : i32
    return %arg0, %c0_i32 : i32, i32
  }
  func.func @transform_1(%arg0: i32) -> (i32, i32) {
    %c0_i32 = arith.constant 0 : i32
    %c0_i32_0 = arith.constant 0 : i32
    %c0_i32_1 = arith.constant 0 : i32
    return %c0_i32, %c0_i32_0 : i32, i32
  }
  func.func @transform_2(%arg0: i32) -> (i32, i32) {
    %c0_i32 = arith.constant 0 : i32
    %c0_i32_0 = arith.constant 0 : i32
    %c0_i32_1 = arith.constant 0 : i32
    return %c0_i32, %c0_i32_0 : i32, i32
  }
  func.func @transform_3(%arg0: i32) -> (i32, i32) {
    %c0_i32 = arith.constant 0 : i32
    %c0_i32_0 = arith.constant 0 : i32
    %c0_i32_1 = arith.constant 0 : i32
    return %c0_i32, %c0_i32_0 : i32, i32
  }
  func.func @transform_4(%arg0: i32) -> (i32, i32) {
    %c0_i32 = arith.constant 0 : i32
    %c0_i32_0 = arith.constant 0 : i32
    %c0_i32_1 = arith.constant 0 : i32
    return %c0_i32, %c0_i32_0 : i32, i32
  }
  func.func @transform_5(%arg0: i32) -> (i32, i32) {
    %c0_i32 = arith.constant 0 : i32
    %c0_i32_0 = arith.constant 0 : i32
    %c0_i32_1 = arith.constant 0 : i32
    return %c0_i32, %c0_i32_0 : i32, i32
  }
  func.func @transform_6(%arg0: i32) -> (i32, i32) {
    %c0_i32 = arith.constant 0 : i32
    %c0_i32_0 = arith.constant 0 : i32
    %c0_i32_1 = arith.constant 0 : i32
    return %c0_i32, %c0_i32_0 : i32, i32
  }
  func.func @transform_7(%arg0: i32) -> (i32, i32) {
    %c0_i32 = arith.constant 0 : i32
    %c0_i32_0 = arith.constant 0 : i32
    return %arg0, %c0_i32 : i32, i32
  }
  func.func @transform_8(%arg0: i32) -> (i32, i32) {
    %c0_i32 = arith.constant 0 : i32
    %c0_i32_0 = arith.constant 0 : i32
    return %arg0, %c0_i32 : i32, i32
  }
  func.func @transform_9(%arg0: i32) -> (i32, i32) {
    %c0_i32 = arith.constant 0 : i32
    %c0_i32_0 = arith.constant 0 : i32
    return %arg0, %c0_i32 : i32, i32
  }
}

module attributes {stable_mosaic.version = 11 : i64} {
  func.func @_flash_attn_kernel(%arg0: i32, %arg1: i32, %arg2: i32, %arg3: memref<1x8x32xf32, #tpu.memory_space<vmem>>, %arg4: memref<1x8x32xf32, #tpu.memory_space<vmem>>, %arg5: memref<1x8x32xf32, #tpu.memory_space<vmem>>, %arg6: memref<1x8x32xf32, #tpu.memory_space<vmem>>, %arg7: memref<8x1xf32, #tpu.memory_space<vmem>>, %arg8: memref<8x1xf32, #tpu.memory_space<vmem>>, %arg9: memref<8x32xf32, #tpu.memory_space<vmem>>) attributes {dimension_semantics = [#tpu.dimension_semantics<parallel>, #tpu.dimension_semantics<parallel>, #tpu.dimension_semantics<arbitrary>], iteration_bounds = array<i64: 2, 1, 1>, scalar_prefetch = 0 : i64, scratch_operands = 3 : i64, tpu.core_type = #tpu.core_type<tc>, window_params = [{transform_indices = @transform_0, window_bounds = array<i64: 1, 8, 32>}, {transform_indices = @transform_1, window_bounds = array<i64: 1, 8, 32>}, {transform_indices = @transform_2, window_bounds = array<i64: 1, 8, 32>}, {transform_indices = @transform_3, window_bounds = array<i64: 1, 8, 32>}]} {
    %c0_i32 = arith.constant 0 : i32
    %0 = arith.cmpi eq, %arg2, %c0_i32 : i32
    %1 = arith.extui %0 : i1 to i32
    %c0_i32_0 = arith.constant 0 : i32
    %2 = arith.cmpi ne, %1, %c0_i32_0 : i32
    scf.if %2 {
      %cst_26 = arith.constant 0xFF800000 : f32
      %35 = vector.broadcast %cst_26 : f32 to vector<8x1xf32>
      %c0_27 = arith.constant 0 : index
      %c0_28 = arith.constant 0 : index
      %36 = vector.load %arg7[%c0_27, %c0_28] : memref<8x1xf32, #tpu.memory_space<vmem>>, vector<8x1xf32>
      tpu.vector_store %arg7[%c0_27, %c0_28], %35 {strides = array<i32>} : memref<8x1xf32, #tpu.memory_space<vmem>>, vector<8x1xf32>,
      %cst_29 = arith.constant 0.000000e+00 : f32
      %37 = vector.broadcast %cst_29 : f32 to vector<8x1xf32>
      %c0_30 = arith.constant 0 : index
      %c0_31 = arith.constant 0 : index
      %38 = vector.load %arg8[%c0_30, %c0_31] : memref<8x1xf32, #tpu.memory_space<vmem>>, vector<8x1xf32>
      tpu.vector_store %arg8[%c0_30, %c0_31], %37 {strides = array<i32>} : memref<8x1xf32, #tpu.memory_space<vmem>>, vector<8x1xf32>,
      %cst_32 = arith.constant 0.000000e+00 : f32
      %39 = vector.broadcast %cst_32 : f32 to vector<8x32xf32>
      %c0_33 = arith.constant 0 : index
      %c0_34 = arith.constant 0 : index
      %40 = vector.load %arg9[%c0_33, %c0_34] : memref<8x32xf32, #tpu.memory_space<vmem>>, vector<8x32xf32>
      tpu.vector_store %arg9[%c0_33, %c0_34], %39 {strides = array<i32>} : memref<8x32xf32, #tpu.memory_space<vmem>>, vector<8x32xf32>,
    } else {
    }
    %c0 = arith.constant 0 : index
    %c0_1 = arith.constant 0 : index
    %c0_2 = arith.constant 0 : index
    %3 = vector.load %arg3[%c0, %c0_1, %c0_2] : memref<1x8x32xf32, #tpu.memory_space<vmem>>, vector<1x8x32xf32>
    %4 = vector.shape_cast %3 : vector<1x8x32xf32> to vector<8x32xf32>
    %c0_3 = arith.constant 0 : index
    %c0_4 = arith.constant 0 : index
    %c0_5 = arith.constant 0 : index
    %5 = vector.load %arg4[%c0_3, %c0_4, %c0_5] : memref<1x8x32xf32, #tpu.memory_space<vmem>>, vector<1x8x32xf32>
    %6 = vector.shape_cast %5 : vector<1x8x32xf32> to vector<8x32xf32>
    %c0_6 = arith.constant 0 : index
    %c0_7 = arith.constant 0 : index
    %c0_8 = arith.constant 0 : index
    %7 = vector.load %arg5[%c0_6, %c0_7, %c0_8] : memref<1x8x32xf32, #tpu.memory_space<vmem>>, vector<1x8x32xf32>
    %8 = vector.shape_cast %7 : vector<1x8x32xf32> to vector<8x32xf32>
    %cst = arith.constant dense<0.000000e+00> : vector<8x8xf32>
    %9 = tpu.matmul %4, %6, %cst {dimension_numbers = #tpu.dot_dimension_numbers<[1], [1], [0], [0], [0, 0, 1, 0], [], []>} : vector<8x32xf32>, vector<8x32xf32>, vector<8x8xf32> -> vector<8x8xf32>
    %c0_9 = arith.constant 0 : index
    %c0_10 = arith.constant 0 : index
    %10 = vector.load %arg7[%c0_9, %c0_10] : memref<8x1xf32, #tpu.memory_space<vmem>>, vector<8x1xf32>
    %cst_11 = arith.constant dense<0xFF800000> : vector<8xf32>
    %11 = vector.multi_reduction <maximumf>, %9, %cst_11 [1] : vector<8x8xf32> to vector<8xf32>
    %12 = vector.shape_cast %11 : vector<8xf32> to vector<8x1xf32>
    %13 = arith.maximumf %10, %12 : vector<8x1xf32>
    %14 = arith.subf %10, %13 : vector<8x1xf32>
    %15 = math.exp %14 : vector<8x1xf32>
    %16 = vector.broadcast %13 : vector<8x1xf32> to vector<8x8xf32>
    %17 = arith.subf %9, %16 : vector<8x8xf32>
    %18 = math.exp %17 : vector<8x8xf32>
    %c0_12 = arith.constant 0 : index
    %c0_13 = arith.constant 0 : index
    %19 = vector.load %arg8[%c0_12, %c0_13] : memref<8x1xf32, #tpu.memory_space<vmem>>, vector<8x1xf32>
    %20 = arith.mulf %15, %19 : vector<8x1xf32>
    %cst_14 = arith.constant dense<0.000000e+00> : vector<8xf32>
    %21 = vector.multi_reduction <add>, %18, %cst_14 [1] : vector<8x8xf32> to vector<8xf32>
    %22 = vector.shape_cast %21 : vector<8xf32> to vector<8x1xf32>
    %23 = arith.addf %20, %22 : vector<8x1xf32>
    %c0_15 = arith.constant 0 : index
    %c0_16 = arith.constant 0 : index
    %24 = vector.load %arg8[%c0_15, %c0_16] : memref<8x1xf32, #tpu.memory_space<vmem>>, vector<8x1xf32>
    tpu.vector_store %arg8[%c0_15, %c0_16], %23 {strides = array<i32>} : memref<8x1xf32, #tpu.memory_space<vmem>>, vector<8x1xf32>,
    %cst_17 = arith.constant dense<0.000000e+00> : vector<8x32xf32>
    %25 = tpu.matmul %18, %8, %cst_17 {dimension_numbers = #tpu.dot_dimension_numbers<[1], [0], [0], [1], [0, 0, 1, 1], [], []>} : vector<8x8xf32>, vector<8x32xf32>, vector<8x32xf32> -> vector<8x32xf32>
    %c0_18 = arith.constant 0 : index
    %c0_19 = arith.constant 0 : index
    %26 = vector.load %arg9[%c0_18, %c0_19] : memref<8x32xf32, #tpu.memory_space<vmem>>, vector<8x32xf32>
    %27 = vector.broadcast %15 : vector<8x1xf32> to vector<8x32xf32>
    %28 = arith.mulf %27, %26 : vector<8x32xf32>
    %29 = arith.addf %28, %25 : vector<8x32xf32>
    %c0_20 = arith.constant 0 : index
    %c0_21 = arith.constant 0 : index
    %30 = vector.load %arg9[%c0_20, %c0_21] : memref<8x32xf32, #tpu.memory_space<vmem>>, vector<8x32xf32>
    tpu.vector_store %arg9[%c0_20, %c0_21], %29 {strides = array<i32>} : memref<8x32xf32, #tpu.memory_space<vmem>>, vector<8x32xf32>,
    %c0_22 = arith.constant 0 : index
    %c0_23 = arith.constant 0 : index
    %31 = vector.load %arg7[%c0_22, %c0_23] : memref<8x1xf32, #tpu.memory_space<vmem>>, vector<8x1xf32>
    tpu.vector_store %arg7[%c0_22, %c0_23], %13 {strides = array<i32>} : memref<8x1xf32, #tpu.memory_space<vmem>>, vector<8x1xf32>,
    %c0_i32_24 = arith.constant 0 : i32
    %32 = arith.cmpi eq, %arg2, %c0_i32_24 : i32
    %33 = arith.extui %32 : i1 to i32
    %c0_i32_25 = arith.constant 0 : i32
    %34 = arith.cmpi ne, %33, %c0_i32_25 : i32
    scf.if %34 {
      %c0_26 = arith.constant 0 : index
      %c0_27 = arith.constant 0 : index
      %35 = vector.load %arg8[%c0_26, %c0_27] : memref<8x1xf32, #tpu.memory_space<vmem>>, vector<8x1xf32>
      %36 = tpu.reciprocal %35 : vector<8x1xf32> -> vector<8x1xf32>
      %c0_28 = arith.constant 0 : index
      %c0_29 = arith.constant 0 : index
      %37 = vector.load %arg9[%c0_28, %c0_29] : memref<8x32xf32, #tpu.memory_space<vmem>>, vector<8x32xf32>
      %38 = vector.broadcast %36 : vector<8x1xf32> to vector<8x32xf32>
      %39 = arith.mulf %37, %38 : vector<8x32xf32>
      %c0_30 = arith.constant 0 : index
      %c0_31 = arith.constant 0 : index
      %c0_32 = arith.constant 0 : index
      %40 = vector.load %arg6[%c0_30, %c0_31, %c0_32] : memref<1x8x32xf32, #tpu.memory_space<vmem>>, vector<1x8x32xf32>
      %41 = vector.shape_cast %40 : vector<1x8x32xf32> to vector<8x32xf32>
      %42 = vector.shape_cast %39 : vector<8x32xf32> to vector<1x8x32xf32>
      tpu.vector_store %arg6[%c0_30, %c0_31, %c0_32], %42 {strides = array<i32>} : memref<1x8x32xf32, #tpu.memory_space<vmem>>, vector<1x8x32xf32>,
    } else {
    }
    return
  }
  func.func @transform_0(%arg0: i32, %arg1: i32, %arg2: i32) -> (i32, i32, i32) {
    %c0_i32 = arith.constant 0 : i32
    %c0_i32_0 = arith.constant 0 : i32
    return %arg0, %arg1, %c0_i32 : i32, i32, i32
  }
  func.func @transform_1(%arg0: i32, %arg1: i32, %arg2: i32) -> (i32, i32, i32) {
    %c0_i32 = arith.constant 0 : i32
    %c0_i32_0 = arith.constant 0 : i32
    return %arg0, %arg2, %c0_i32 : i32, i32, i32
  }
  func.func @transform_2(%arg0: i32, %arg1: i32, %arg2: i32) -> (i32, i32, i32) {
    %c0_i32 = arith.constant 0 : i32
    %c0_i32_0 = arith.constant 0 : i32
    return %arg0, %arg2, %c0_i32 : i32, i32, i32
  }
  func.func @transform_3(%arg0: i32, %arg1: i32, %arg2: i32) -> (i32, i32, i32) {
    %c0_i32 = arith.constant 0 : i32
    %c0_i32_0 = arith.constant 0 : i32
    return %arg0, %arg1, %c0_i32 : i32, i32, i32
  }
}

</mosaic_0001>

<llo_original>
// kernel: self_attention.2
$region0: #{self_attention.2}
  #allocation0 [shape = 'u32[]', space=smem, size = 0x4, offset = 0x4, fixed_abs, tag = 'smem constant byte address 0x4 - core index']
  #allocation1 [shape = 'u32[144,128]{1,0:T(1,128)}', space=vmem, size = 0x12000, scoped, tag = 'internal scratch']
  %s0 = inlined_call_operand.hbm [shape: f32[16,32], index: 0, kind: input, shape index: {}]
  %s1 = inlined_call_operand.hbm [shape: f32[32,32], index: 1, kind: input, shape index: {}]
  %s2 = inlined_call_operand.hbm [shape: f32[32,32], index: 2, kind: input, shape index: {}]
  %s3 = inlined_call_operand.hbm [shape: f32[32,32], index: 3, kind: input, shape index: {}]
  %s4 = inlined_call_operand.vmem [shape: f32[1,32], index: 4, kind: input, shape index: {}]
  %s5 = inlined_call_operand.vmem [shape: f32[1,32], index: 5, kind: input, shape index: {}]
  %s6 = inlined_call_operand.vmem [shape: f32[1,32], index: 6, kind: input, shape index: {}]
  %s7 = inlined_call_operand.vmem [shape: f32[16,32], index: 7, kind: output, shape index: {0}]
  %s8 = inlined_call_operand.vmem [shape: f32[16,32], index: 8, kind: output, shape index: {1}]
  %s9 = inlined_call_operand.vmem [shape: f32[16,32], index: 9, kind: output, shape index: {2}]
  %10 = xla_tuple %s7, %s8, %s9
  %s11 = sld [smem:[#allocation0]]
  $region70: #{self_attention.2} parent=0
    _
  %s13 = ssub.s32 1, %s11
  %s14 = scalar_select 0, %s13, %s11
  $region1: #{self_attention.2} parent=0
    #allocation2 [shape = 'u8[8192]{0}', space=vmem, size = 0x2000, scoped, tag = 'input window, operand 0, single buffered']
    #allocation3 [shape = 's32[1]{0}', space=sflag, size = 0x4, scoped, tag = 'scoped memory for self_attention.2']
    #allocation4 [shape = 'u8[16384]{0}', space=vmem, size = 0x4000, scoped, tag = 'input window, operand 1, single buffered']
    #allocation5 [shape = 's32[1]{0}', space=sflag, size = 0x4, scoped, tag = 'scoped memory for self_attention.2']
    #allocation6 [shape = 'u8[16384]{0}', space=vmem, size = 0x4000, scoped, tag = 'input window, operand 2, single buffered']
    #allocation7 [shape = 'u8[16384]{0}', space=vmem, size = 0x4000, scoped, tag = 'input window, operand 3, single buffered']
    #allocation8 [shape = 's32[1]{0}', space=sflag, size = 0x4, scoped, tag = 'scoped memory for self_attention.2']
    %15 = vsyncpa [#allocation3], 0
    %16 = vsyncpa [#allocation5], 0
    %17 = vsyncpa [#allocation8], 0
    // Predicated region
    $region2: #{self_attention.2} parent=1 // pred_check
      _
    $region3: #{self_attention.2} parent=1 // pred_check_branch
      %19 = sbr.rel (0) target = $region5
    $region4: #{self_attention.2} parent=1 // pred_region
      %s21 = ssub.s32 256, 256
      %22 = vsyncadd [#allocation3], %s21
      %s23 = sshll.u32 [#allocation2], 4
      %s24 = int_to_ptr.vmem [resolvable:$true] %s23
      %29 = dma.hbm_to_vmem [thread:$0]  %s0, 256, %s24, [#allocation3], 128, 128, 8
    $region5: #{self_attention.2} parent=1 // pred_fallthru
      _
    // Predicated region
    $region6: #{self_attention.2} parent=1 // pred_check
      _
    $region7: #{self_attention.2} parent=1 // pred_check_branch
      %31 = sbr.rel (0) target = $region9
    $region8: #{self_attention.2} parent=1 // pred_region
      %s33 = ssub.s32 512, 512
      %34 = vsyncadd [#allocation5], %s33
      %s35 = sshll.u32 [#allocation4], 4
      %s36 = int_to_ptr.vmem [resolvable:$true] %s35
      %41 = dma.hbm_to_vmem [thread:$0]  %s1, 512, %s36, [#allocation5], 128, 128, 8
    $region9: #{self_attention.2} parent=1 // pred_fallthru
      _
    // Predicated region
    $region10: #{self_attention.2} parent=1 // pred_check
      _
    $region11: #{self_attention.2} parent=1 // pred_check_branch
      %43 = sbr.rel (0) target = $region13
    $region12: #{self_attention.2} parent=1 // pred_region
      %s45 = ssub.s32 512, 512
      %46 = vsyncadd [#allocation5], %s45
      %s47 = sshll.u32 [#allocation6], 4
      %s48 = int_to_ptr.vmem [resolvable:$true] %s47
      %53 = dma.hbm_to_vmem [thread:$0]  %s2, 512, %s48, [#allocation5], 128, 128, 8
    $region13: #{self_attention.2} parent=1 // pred_fallthru
      _
    // Predicated region
    $region14: #{self_attention.2} parent=1 // pred_check
      _
    $region15: #{self_attention.2} parent=1 // pred_check_branch
      %55 = sbr.rel (0) target = $region17
    $region16: #{self_attention.2} parent=1 // pred_region
      %s57 = ssub.s32 512, 512
      %58 = vsyncadd [#allocation8], %s57
      %s59 = sshll.u32 [#allocation7], 4
      %s60 = int_to_ptr.vmem [resolvable:$true] %s59
      %65 = dma.hbm_to_vmem [thread:$0]  %s3, 512, %s60, [#allocation8], 128, 128, 8
    $region17: #{self_attention.2} parent=1 // pred_fallthru
      _
    // Predicated region
    $region18: #{self_attention.2} parent=1 // pred_check
      _
    $region19: #{self_attention.2} parent=1 // pred_check_branch
      %67 = sbr.rel (0) target = $region21
    $region20: #{self_attention.2} parent=1 // pred_region
      _
    $region21: #{self_attention.2} parent=1 // pred_fallthru
      _
    // Predicated region
    $region22: #{self_attention.2} parent=1 // pred_check
      _
    $region23: #{self_attention.2} parent=1 // pred_check_branch
      %69 = sbr.rel (0) target = $region25
    $region24: #{self_attention.2} parent=1 // pred_region
      _
    $region25: #{self_attention.2} parent=1 // pred_fallthru
      _
    // Predicated region
    $region26: #{self_attention.2} parent=1 // pred_check
      _
    $region27: #{self_attention.2} parent=1 // pred_check_branch
      %71 = sbr.rel (0) target = $region29
    $region28: #{self_attention.2} parent=1 // pred_region
      _
    $region29: #{self_attention.2} parent=1 // pred_fallthru
      _
    // Predicated region
    $region30: #{self_attention.2} parent=1 // pred_check
      _
    $region31: #{self_attention.2} parent=1 // pred_check_branch
      %73 = sbr.rel (0) target = $region33
    $region32: #{self_attention.2} parent=1 // pred_region
      %74 = dma.done [#allocation3], 256
    $region33: #{self_attention.2} parent=1 // pred_fallthru
      _
    // Predicated region
    $region34: #{self_attention.2} parent=1 // pred_check
      _
    $region35: #{self_attention.2} parent=1 // pred_check_branch
      %76 = sbr.rel (0) target = $region37
    $region36: #{self_attention.2} parent=1 // pred_region
      %77 = dma.done [#allocation5], 512
    $region37: #{self_attention.2} parent=1 // pred_fallthru
      _
    // Predicated region
    $region38: #{self_attention.2} parent=1 // pred_check
      _
    $region39: #{self_attention.2} parent=1 // pred_check_branch
      %79 = sbr.rel (0) target = $region41
    $region40: #{self_attention.2} parent=1 // pred_region
      %80 = dma.done [#allocation5], 512
    $region41: #{self_attention.2} parent=1 // pred_fallthru
      _
    // Predicated region
    $region42: #{self_attention.2} parent=1 // pred_check
      _
    $region43: #{self_attention.2} parent=1 // pred_check_branch
      %82 = sbr.rel (0) target = $region45
    $region44: #{self_attention.2} parent=1 // pred_region
      %83 = dma.done [#allocation8], 512
    $region45: #{self_attention.2} parent=1 // pred_fallthru
      _
    %v84 = vld [vmem:[#allocation2] sm:$0xff]
    %v85 = vld [vmem:[#allocation2 + $0x8] sm:$0xff]
    %v86 = vld [vmem:[#allocation4] sm:$0xff]
    %v87 = vld [vmem:[#allocation4 + $0x8] sm:$0xff]
    %v88 = vld [vmem:[#allocation4 + $0x10] sm:$0xff]
    %v89 = vld [vmem:[#allocation4 + $0x18] sm:$0xff]
    %v90 = vld [vmem:[%s4] sm:$0x1]
    %v92 = vlaneseq
    %v93 = vshrl.u32 %v92, 7
    %v94 = vsub.s32 0, %v93
    %v95 = vrot.slane %v90, %v94
    %vm97 = vcmask 261120
    %v99 = vsel %vm97, %v84, 0
    %v102 = vsel %vm97, %v85, 0
    %104 = vmatprep.subr.mxu0 0.0
    %105 = vmatpush1.msra.mxu0 0.0
    %106 = vmatprep.subr.mxu0 0.0
    %107 = vmatpush1.msra.mxu0 0.0
    %108 = vmatprep.subr.mxu0 0.0
    %109 = vmatpush1.msra.mxu0 0.0
    %110 = vmatprep.subr.mxu0 0.0
    %111 = vmatpush1.msra.mxu0 0.0
    %112 = vmatprep.subr.mxu0 0.0
    %113 = vmatpush1.msra.mxu0 0.0
    %114 = vmatprep.subr.mxu0 0.0
    %115 = vmatpush1.msra.mxu0 0.0
    %116 = vmatprep.subr.mxu0 0.0
    %117 = vmatpush1.msra.mxu0 0.0
    %118 = vmatprep.subr.mxu0 0.0
    %119 = vmatpush1.msra.mxu0 0.0
    %120 = vmatprep.subr.mxu0 0.0
    %121 = vmatpush1.msra.mxu0 0.0
    %122 = vmatprep.subr.mxu0 0.0
    %123 = vmatpush1.msra.mxu0 0.0
    %124 = vmatprep.subr.mxu0 0.0
    %125 = vmatpush1.msra.mxu0 0.0
    %126 = vmatprep.subr.mxu0 0.0
    %127 = vmatpush1.msra.mxu0 0.0
    %128 = vmatprep.subr.mxu0 0.0
    %129 = vmatpush1.msra.mxu0 %v89
    %130 = vmatprep.subr.mxu0 0.0
    %131 = vmatpush1.msra.mxu0 %v88
    %132 = vmatprep.subr.mxu0 0.0
    %133 = vmatpush1.msra.mxu0 %v87
    %134 = vmatprep.subr.mxu0 0.0
    %135 = vmatpush1.msra.mxu0 %v86
    %136 = vmatprep.subr.mxu0 0.0
    %137 = vmatpush2.msra.mxu0 0.0
    %138 = vmatprep.subr.mxu0 0.0
    %139 = vmatpush2.msra.mxu0 0.0
    %140 = vmatprep.subr.mxu0 0.0
    %141 = vmatpush2.msra.mxu0 0.0
    %142 = vmatprep.subr.mxu0 0.0
    %143 = vmatpush2.msra.mxu0 0.0
    %144 = vmatprep.subr.mxu0 0.0
    %145 = vmatpush2.msra.mxu0 0.0
    %146 = vmatprep.subr.mxu0 0.0
    %147 = vmatpush2.msra.mxu0 0.0
    %148 = vmatprep.subr.mxu0 0.0
    %149 = vmatpush2.msra.mxu0 0.0
    %150 = vmatprep.subr.mxu0 0.0
    %151 = vmatpush2.msra.mxu0 0.0
    %152 = vmatprep.subr.mxu0 0.0
    %153 = vmatpush2.msra.mxu0 0.0
    %154 = vmatprep.subr.mxu0 0.0
    %155 = vmatpush2.msra.mxu0 0.0
    %156 = vmatprep.subr.mxu0 0.0
    %157 = vmatpush2.msra.mxu0 0.0
    %158 = vmatprep.subr.mxu0 0.0
    %159 = vmatpush2.msra.mxu0 0.0
    %160 = vmatprep.subr.mxu0 0.0
    %161 = vmatpush2.msra.mxu0 0.0
    %162 = vmatprep.subr.mxu0 0.0
    %163 = vmatpush2.msra.mxu0 0.0
    %164 = vmatprep.subr.mxu0 0.0
    %165 = vmatpush2.msra.mxu0 0.0
    %166 = vmatprep.subr.mxu0 0.0
    %167 = vmatpush2.msra.mxu0 0.0
    %168 = vmatprep.mubr.f32.mxu0 0.0
    %169 = vmatmul.mubr.f32.gmra.mxu0 %v99
    %v170 = vpop.f32.mrf.mxu0
    %v171 = vadd.f32 %v95, %v170
    %v172 = vpop.f32.mrf.mxu0
    %173 = vmatprep.mubr.f32.mxu0 0.0
    %174 = vmatmul.mubr.f32.gmra.mxu0 %v102
    %v175 = vpop.f32.mrf.mxu0
    %v176 = vadd.f32 %v95, %v175
    %v177 = vpop.f32.mrf.mxu0
    %178 = vdwg.mxu0
    %v179 = vld [vmem:[#allocation6] sm:$0xff]
    %v180 = vld [vmem:[#allocation6 + $0x8] sm:$0xff]
    %v181 = vld [vmem:[#allocation6 + $0x10] sm:$0xff]
    %v182 = vld [vmem:[#allocation6 + $0x18] sm:$0xff]
    %v183 = vld [vmem:[%s5] sm:$0x1]
    %v185 = vlaneseq
    %v186 = vshrl.u32 %v185, 7
    %v187 = vsub.s32 0, %v186
    %v188 = vrot.slane %v183, %v187
    %190 = vmatprep.subr.mxu0 0.0
    %191 = vmatpush1.msra.mxu0 0.0
    %192 = vmatprep.subr.mxu0 0.0
    %193 = vmatpush1.msra.mxu0 0.0
    %194 = vmatprep.subr.mxu0 0.0
    %195 = vmatpush1.msra.mxu0 0.0
    %196 = vmatprep.subr.mxu0 0.0
    %197 = vmatpush1.msra.mxu0 0.0
    %198 = vmatprep.subr.mxu0 0.0
    %199 = vmatpush1.msra.mxu0 0.0
    %200 = vmatprep.subr.mxu0 0.0
    %201 = vmatpush1.msra.mxu0 0.0
    %202 = vmatprep.subr.mxu0 0.0
    %203 = vmatpush1.msra.mxu0 0.0
    %204 = vmatprep.subr.mxu0 0.0
    %205 = vmatpush1.msra.mxu0 0.0
    %206 = vmatprep.subr.mxu0 0.0
    %207 = vmatpush1.msra.mxu0 0.0
    %208 = vmatprep.subr.mxu0 0.0
    %209 = vmatpush1.msra.mxu0 0.0
    %210 = vmatprep.subr.mxu0 0.0
    %211 = vmatpush1.msra.mxu0 0.0
    %212 = vmatprep.subr.mxu0 0.0
    %213 = vmatpush1.msra.mxu0 0.0
    %214 = vmatprep.subr.mxu0 0.0
    %215 = vmatpush1.msra.mxu0 %v182
    %216 = vmatprep.subr.mxu0 0.0
    %217 = vmatpush1.msra.mxu0 %v181
    %218 = vmatprep.subr.mxu0 0.0
    %219 = vmatpush1.msra.mxu0 %v180
    %220 = vmatprep.subr.mxu0 0.0
    %221 = vmatpush1.msra.mxu0 %v179
    %222 = vmatprep.subr.mxu0 0.0
    %223 = vmatpush2.msra.mxu0 0.0
    %224 = vmatprep.subr.mxu0 0.0
    %225 = vmatpush2.msra.mxu0 0.0
    %226 = vmatprep.subr.mxu0 0.0
    %227 = vmatpush2.msra.mxu0 0.0
    %228 = vmatprep.subr.mxu0 0.0
    %229 = vmatpush2.msra.mxu0 0.0
    %230 = vmatprep.subr.mxu0 0.0
    %231 = vmatpush2.msra.mxu0 0.0
    %232 = vmatprep.subr.mxu0 0.0
    %233 = vmatpush2.msra.mxu0 0.0
    %234 = vmatprep.subr.mxu0 0.0
    %235 = vmatpush2.msra.mxu0 0.0
    %236 = vmatprep.subr.mxu0 0.0
    %237 = vmatpush2.msra.mxu0 0.0
    %238 = vmatprep.subr.mxu0 0.0
    %239 = vmatpush2.msra.mxu0 0.0
    %240 = vmatprep.subr.mxu0 0.0
    %241 = vmatpush2.msra.mxu0 0.0
    %242 = vmatprep.subr.mxu0 0.0
    %243 = vmatpush2.msra.mxu0 0.0
    %244 = vmatprep.subr.mxu0 0.0
    %245 = vmatpush2.msra.mxu0 0.0
    %246 = vmatprep.subr.mxu0 0.0
    %247 = vmatpush2.msra.mxu0 0.0
    %248 = vmatprep.subr.mxu0 0.0
    %249 = vmatpush2.msra.mxu0 0.0
    %250 = vmatprep.subr.mxu0 0.0
    %251 = vmatpush2.msra.mxu0 0.0
    %252 = vmatprep.subr.mxu0 0.0
    %253 = vmatpush2.msra.mxu0 0.0
    %254 = vmatprep.mubr.f32.mxu0 0.0
    %255 = vmatmul.mubr.f32.gmra.mxu0 %v99
    %v256 = vpop.f32.mrf.mxu0
    %v257 = vadd.f32 %v188, %v256
    %v258 = vpop.f32.mrf.mxu0
    %259 = vmatprep.mubr.f32.mxu0 0.0
    %260 = vmatmul.mubr.f32.gmra.mxu0 %v102
    %v261 = vpop.f32.mrf.mxu0
    %v262 = vadd.f32 %v188, %v261
    %v263 = vpop.f32.mrf.mxu0
    %264 = vdwg.mxu0
    %v265 = vld [vmem:[#allocation7] sm:$0xff]
    %v266 = vld [vmem:[#allocation7 + $0x8] sm:$0xff]
    %v267 = vld [vmem:[#allocation7 + $0x10] sm:$0xff]
    %v268 = vld [vmem:[#allocation7 + $0x18] sm:$0xff]
    %v269 = vld [vmem:[%s6] sm:$0x1]
    %v271 = vlaneseq
    %v272 = vshrl.u32 %v271, 7
    %v273 = vsub.s32 0, %v272
    %v274 = vrot.slane %v269, %v273
    %276 = vmatprep.subr.mxu0 0.0
    %277 = vmatpush1.msra.mxu0 0.0
    %278 = vmatprep.subr.mxu0 0.0
    %279 = vmatpush1.msra.mxu0 0.0
    %280 = vmatprep.subr.mxu0 0.0
    %281 = vmatpush1.msra.mxu0 0.0
    %282 = vmatprep.subr.mxu0 0.0
    %283 = vmatpush1.msra.mxu0 0.0
    %284 = vmatprep.subr.mxu0 0.0
    %285 = vmatpush1.msra.mxu0 0.0
    %286 = vmatprep.subr.mxu0 0.0
    %287 = vmatpush1.msra.mxu0 0.0
    %288 = vmatprep.subr.mxu0 0.0
    %289 = vmatpush1.msra.mxu0 0.0
    %290 = vmatprep.subr.mxu0 0.0
    %291 = vmatpush1.msra.mxu0 0.0
    %292 = vmatprep.subr.mxu0 0.0
    %293 = vmatpush1.msra.mxu0 0.0
    %294 = vmatprep.subr.mxu0 0.0
    %295 = vmatpush1.msra.mxu0 0.0
    %296 = vmatprep.subr.mxu0 0.0
    %297 = vmatpush1.msra.mxu0 0.0
    %298 = vmatprep.subr.mxu0 0.0
    %299 = vmatpush1.msra.mxu0 0.0
    %300 = vmatprep.subr.mxu0 0.0
    %301 = vmatpush1.msra.mxu0 %v268
    %302 = vmatprep.subr.mxu0 0.0
    %303 = vmatpush1.msra.mxu0 %v267
    %304 = vmatprep.subr.mxu0 0.0
    %305 = vmatpush1.msra.mxu0 %v266
    %306 = vmatprep.subr.mxu0 0.0
    %307 = vmatpush1.msra.mxu0 %v265
    %308 = vmatprep.subr.mxu0 0.0
    %309 = vmatpush2.msra.mxu0 0.0
    %310 = vmatprep.subr.mxu0 0.0
    %311 = vmatpush2.msra.mxu0 0.0
    %312 = vmatprep.subr.mxu0 0.0
    %313 = vmatpush2.msra.mxu0 0.0
    %314 = vmatprep.subr.mxu0 0.0
    %315 = vmatpush2.msra.mxu0 0.0
    %316 = vmatprep.subr.mxu0 0.0
    %317 = vmatpush2.msra.mxu0 0.0
    %318 = vmatprep.subr.mxu0 0.0
    %319 = vmatpush2.msra.mxu0 0.0
    %320 = vmatprep.subr.mxu0 0.0
    %321 = vmatpush2.msra.mxu0 0.0
    %322 = vmatprep.subr.mxu0 0.0
    %323 = vmatpush2.msra.mxu0 0.0
    %324 = vmatprep.subr.mxu0 0.0
    %325 = vmatpush2.msra.mxu0 0.0
    %326 = vmatprep.subr.mxu0 0.0
    %327 = vmatpush2.msra.mxu0 0.0
    %328 = vmatprep.subr.mxu0 0.0
    %329 = vmatpush2.msra.mxu0 0.0
    %330 = vmatprep.subr.mxu0 0.0
    %331 = vmatpush2.msra.mxu0 0.0
    %332 = vmatprep.subr.mxu0 0.0
    %333 = vmatpush2.msra.mxu0 0.0
    %334 = vmatprep.subr.mxu0 0.0
    %335 = vmatpush2.msra.mxu0 0.0
    %336 = vmatprep.subr.mxu0 0.0
    %337 = vmatpush2.msra.mxu0 0.0
    %338 = vmatprep.subr.mxu0 0.0
    %339 = vmatpush2.msra.mxu0 0.0
    %340 = vmatprep.mubr.f32.mxu0 0.0
    %341 = vmatmul.mubr.f32.gmra.mxu0 %v99
    %v342 = vpop.f32.mrf.mxu0
    %v343 = vadd.f32 %v274, %v342
    %v344 = vpop.f32.mrf.mxu0
    %345 = vmatprep.mubr.f32.mxu0 0.0
    %346 = vmatmul.mubr.f32.gmra.mxu0 %v102
    %v347 = vpop.f32.mrf.mxu0
    %v348 = vadd.f32 %v274, %v347
    %v349 = vpop.f32.mrf.mxu0
    %350 = vdwg.mxu0
    %351 = vst.msk [vmem:[%s7] sm:$0xff] %vm97, %v171
    %352 = vst.msk [vmem:[%s7 + $0x8] sm:$0xff] %vm97, %v176
    %353 = vst.msk [vmem:[%s8] sm:$0xff] %vm97, %v257
    %354 = vst.msk [vmem:[%s8 + $0x8] sm:$0xff] %vm97, %v262
    %355 = vst.msk [vmem:[%s9] sm:$0xff] %vm97, %v343
    %356 = vst.msk [vmem:[%s9 + $0x8] sm:$0xff] %vm97, %v348
    // Predicated region
    $region46: #{self_attention.2} parent=1 // pred_check
      _
    $region47: #{self_attention.2} parent=1 // pred_check_branch
      %358 = sbr.rel (0) target = $region49
    $region48: #{self_attention.2} parent=1 // pred_region
      _
    $region49: #{self_attention.2} parent=1 // pred_fallthru
      _
    // Predicated region
    $region50: #{self_attention.2} parent=1 // pred_check
      _
    $region51: #{self_attention.2} parent=1 // pred_check_branch
      %360 = sbr.rel (0) target = $region53
    $region52: #{self_attention.2} parent=1 // pred_region
      _
    $region53: #{self_attention.2} parent=1 // pred_fallthru
      _
    // Predicated region
    $region54: #{self_attention.2} parent=1 // pred_check
      _
    $region55: #{self_attention.2} parent=1 // pred_check_branch
      %362 = sbr.rel (0) target = $region57
    $region56: #{self_attention.2} parent=1 // pred_region
      _
    $region57: #{self_attention.2} parent=1 // pred_fallthru
      _
    // Predicated region
    $region58: #{self_attention.2} parent=1 // pred_check
      _
    $region59: #{self_attention.2} parent=1 // pred_check_branch
      %364 = sbr.rel (0) target = $region61
    $region60: #{self_attention.2} parent=1 // pred_region
      _
    $region61: #{self_attention.2} parent=1 // pred_fallthru
      _
    // Predicated region
    $region62: #{self_attention.2} parent=1 // pred_check
      _
    $region63: #{self_attention.2} parent=1 // pred_check_branch
      %366 = sbr.rel (0) target = $region65
    $region64: #{self_attention.2} parent=1 // pred_region
      _
    $region65: #{self_attention.2} parent=1 // pred_fallthru
      _
    // Predicated region
    $region66: #{self_attention.2} parent=1 // pred_check
      _
    $region67: #{self_attention.2} parent=1 // pred_check_branch
      %368 = sbr.rel (0) target = $region69
    $region68: #{self_attention.2} parent=1 // pred_region
      _
    $region69: #{self_attention.2} parent=1 // pred_fallthru
      _
    %369 = vsyncpa [#allocation3], 1
    %370 = vsyncpa [#allocation5], 1
    %371 = vsyncpa [#allocation8], 1

// kernel: self_attention.3
$region0: #{self_attention.3}
  #allocation0 [shape = 'u32[]', space=smem, size = 0x4, offset = 0x4, fixed_abs, tag = 'smem constant byte address 0x4 - core index']
  #allocation1 [shape = 'u32[144,128]{1,0:T(1,128)}', space=vmem, size = 0x12000, scoped, tag = 'internal scratch']
  #allocation2 [shape = 'f32[8,1]{1,0:T(8,128)}', space=vmem, size = 0x1000, scoped, tag = 'scratch operand']
  #allocation3 [shape = 'f32[8,1]{1,0:T(8,128)}', space=vmem, size = 0x1000, scoped, tag = 'scratch operand']
  #allocation4 [shape = 'f32[8,32]{1,0:T(8,128)}', space=vmem, size = 0x1000, scoped, tag = 'scratch operand']
  %s0 = inlined_call_operand.vmem [shape: f32[2,8,32], index: 0, kind: input, shape index: {}]
  %s1 = inlined_call_operand.vmem [shape: f32[2,8,32], index: 1, kind: input, shape index: {}]
  %s2 = inlined_call_operand.vmem [shape: f32[2,8,32], index: 2, kind: input, shape index: {}]
  %s3 = inlined_call_operand.hbm [shape: f32[2,8,32], index: 3, kind: output, shape index: {}]
  %s4 = sld [smem:[#allocation0]]
  $region53: #{self_attention.3} parent=0
    _
  %s6 = ssub.s32 1, %s4
  %s7 = scalar_select 0, %s6, %s4
  $region1: #{self_attention.3} parent=0
    #allocation5 [shape = 'u8[8192]{0}', space=vmem, size = 0x2000, scoped, tag = 'output window, operand 0']
    #allocation6 [shape = 's32[2]{0}', space=sflag, size = 0x8, scoped, tag = 'scoped memory for self_attention.3']
    %8 = vsyncpa [#allocation6], 0
    %s9 = scalar_lea.sflag [#allocation6], 1
    %10 = vsyncpa %s9, 0
    loop: start=0, step=1, limit=4
    $region2: #{self_attention.3} parent=1 // loop_pre_header
      _
    $region3: #{self_attention.3} parent=1 // loop_header
      %s12 = sphi 0, %s16
      %p13 = scmp.ge.s32.totalorder %s12, 4
      %s19 = sphi 0, %s38
      %s20 = sphi 0, %s34
      %s21 = sphi 0, %s30
      %s22 = sphi 0, %s19
      %s23 = sphi 0, %s20
      %s24 = sphi 0, %s21
      %s25 = sphi 0, %s22
      %s26 = sphi 0, %s23
      %s27 = sphi 0, %s24
      %s43 = sphi 0, %s45
      %s46 = sphi 0, %s43
      %s47 = sphi 0, %s46
      %s63 = sphi 0, %s47
      %s71 = sphi 0, %s73
      %s74 = sphi 0, %s71
      %s75 = sphi 0, %s74
      %s91 = sphi 0, %s75
      %s99 = sphi 0, %s101
      %s102 = sphi 0, %s99
      %s103 = sphi 0, %s102
      %s119 = sphi 0, %s103
      %s127 = sphi 0, %s129
      %s130 = sphi 0, %s127
      %s131 = sphi 0, %s130
      %s147 = sphi 0, %s131
    $region4: #{self_attention.3} parent=1 // loop_header_branch
      %15 = sbr.rel (%p13) target = $region8
    $region5: #{self_attention.3} parent=1 // loop_body
      %s17 = ssub.s32 %s12, 1
      %s18 = ssub.s32 %s12, 2
      %s28 = sadd.s32 1, %s21
      %p29 = scmp.ge.s32.totalorder %s28, 1
      %s30 = scalar_select %p29, 0, %s28
      %s31 = sadd.s32 1, %s20
      %s32 = scalar_select %p29, %s31, %s20
      %p33 = scmp.ge.s32.totalorder %s32, 1
      %s34 = scalar_select %p33, 0, %s32
      %s35 = sadd.s32 1, %s19
      %s36 = scalar_select %p33, %s35, %s19
      %p37 = scmp.ge.s32.totalorder %s36, 2
      %s38 = scalar_select %p37, 0, %s36
      %s39 = ssub.s32 %s19, %s38
      %s40 = ssub.s32 %s20, %s34
      %s41 = sor.u32 %s39, %s40
      %p42 = scmp.eq.s32.totalorder %s41, 0
      %s44 = sadd.s32 %s43, 1
      %s45 = scalar_select %p42, %s43, %s44
      %p48 = pneg %p42
      %p49 = scmp.eq.s32.totalorder %s12, 1
      %p50 = por %p48, %p49
      %p51 = scmp.ne.s32.totalorder %s43, %s46
      %p52 = scmp.eq.s32.totalorder %s12, 0
      %p53 = por %p51, %p52
      %p54 = scmp.ne.s32.totalorder %s43, %s46
      %p55 = scmp.eq.s32.totalorder %s17, 1
      %p56 = por %p54, %p55
      %p57 = scmp.ne.s32.totalorder %s46, %s47
      %p58 = scmp.eq.s32.totalorder %s17, 0
      %p59 = por %p57, %p58
      %p60 = scmp.ne.s32.totalorder %s46, %s47
      %p61 = scmp.eq.s32.totalorder %s18, 1
      %p62 = por %p60, %p61
      %p64 = scmp.ne.s32.totalorder %s47, %s63
      %p65 = scmp.eq.s32.totalorder %s18, 0
      %p66 = por %p64, %p65
      %s67 = ssub.s32 %s19, %s38
      %s68 = ssub.s32 %s21, %s30
      %s69 = sor.u32 %s67, %s68
      %p70 = scmp.eq.s32.totalorder %s69, 0
      %s72 = sadd.s32 %s71, 1
      %s73 = scalar_select %p70, %s71, %s72
      %p76 = pneg %p70
      %p77 = scmp.eq.s32.totalorder %s12, 1
      %p78 = por %p76, %p77
      %p79 = scmp.ne.s32.totalorder %s71, %s74
      %p80 = scmp.eq.s32.totalorder %s12, 0
      %p81 = por %p79, %p80
      %p82 = scmp.ne.s32.totalorder %s71, %s74
      %p83 = scmp.eq.s32.totalorder %s17, 1
      %p84 = por %p82, %p83
      %p85 = scmp.ne.s32.totalorder %s74, %s75
      %p86 = scmp.eq.s32.totalorder %s17, 0
      %p87 = por %p85, %p86
      %p88 = scmp.ne.s32.totalorder %s74, %s75
      %p89 = scmp.eq.s32.totalorder %s18, 1
      %p90 = por %p88, %p89
      %p92 = scmp.ne.s32.totalorder %s75, %s91
      %p93 = scmp.eq.s32.totalorder %s18, 0
      %p94 = por %p92, %p93
      %s95 = ssub.s32 %s19, %s38
      %s96 = ssub.s32 %s21, %s30
      %s97 = sor.u32 %s95, %s96
      %p98 = scmp.eq.s32.totalorder %s97, 0
      %s100 = sadd.s32 %s99, 1
      %s101 = scalar_select %p98, %s99, %s100
      %p104 = pneg %p98
      %p105 = scmp.eq.s32.totalorder %s12, 1
      %p106 = por %p104, %p105
      %p107 = scmp.ne.s32.totalorder %s99, %s102
      %p108 = scmp.eq.s32.totalorder %s12, 0
      %p109 = por %p107, %p108
      %p110 = scmp.ne.s32.totalorder %s99, %s102
      %p111 = scmp.eq.s32.totalorder %s17, 1
      %p112 = por %p110, %p111
      %p113 = scmp.ne.s32.totalorder %s102, %s103
      %p114 = scmp.eq.s32.totalorder %s17, 0
      %p115 = por %p113, %p114
      %p116 = scmp.ne.s32.totalorder %s102, %s103
      %p117 = scmp.eq.s32.totalorder %s18, 1
      %p118 = por %p116, %p117
      %p120 = scmp.ne.s32.totalorder %s103, %s119
      %p121 = scmp.eq.s32.totalorder %s18, 0
      %p122 = por %p120, %p121
      %s123 = ssub.s32 %s19, %s38
      %s124 = ssub.s32 %s20, %s34
      %s125 = sor.u32 %s123, %s124
      %p126 = scmp.eq.s32.totalorder %s125, 0
      %s128 = sadd.s32 %s127, 1
      %s129 = scalar_select %p126, %s127, %s128
      %p132 = pneg %p126
      %p133 = scmp.eq.s32.totalorder %s12, 1
      %p134 = por %p132, %p133
      %p135 = scmp.ne.s32.totalorder %s127, %s130
      %p136 = scmp.eq.s32.totalorder %s12, 0
      %p137 = por %p135, %p136
      %p138 = scmp.ne.s32.totalorder %s127, %s130
      %p139 = scmp.eq.s32.totalorder %s17, 1
      %p140 = por %p138, %p139
      %p141 = scmp.ne.s32.totalorder %s130, %s131
      %p142 = scmp.eq.s32.totalorder %s17, 0
      %p143 = por %p141, %p142
      %p144 = scmp.ne.s32.totalorder %s130, %s131
      %p145 = scmp.eq.s32.totalorder %s18, 1
      %p146 = por %p144, %p145
      %p148 = scmp.ne.s32.totalorder %s131, %s147
      %p149 = scmp.eq.s32.totalorder %s18, 0
      %p150 = por %p148, %p149
      %p151 = scmp.le.s32.totalorder 1, %s12
      %p152 = scmp.lt.s32.totalorder %s12, 3
      %p153 = pnand %p151, %p152
      %p154 = pneg %p153
      // Predicated region
      $region9: #{self_attention.3} parent=5 // pred_check
        _
      $region10: #{self_attention.3} parent=5 // pred_check_branch
        %156 = sbr.rel (%p153) target = $region12
      $region11: #{self_attention.3} parent=5 // pred_region
        %s157 = ssub.s32 %s12, 1
      $region12: #{self_attention.3} parent=5 // pred_fallthru
        _
      %p158 = scmp.lt.s32.totalorder %s12, 2
      // Predicated region
      $region13: #{self_attention.3} parent=5 // pred_check
        %p159 = pneg %p158
      $region14: #{self_attention.3} parent=5 // pred_check_branch
        %161 = sbr.rel (%p159) target = $region16
      $region15: #{self_attention.3} parent=5 // pred_region
        // Predicated region
        $region17: #{self_attention.3} parent=15 // pred_check
          %p162 = pneg %p53
        $region18: #{self_attention.3} parent=15 // pred_check_branch
          %164 = sbr.rel (%p162) target = $region20
        $region19: #{self_attention.3} parent=15 // pred_region
          %p165 = scmp.lt.s32.totalorder %s19, 1
          %s166 = scalar_select %p165, %s19, 1
          %p167 = scmp.lt.s32.totalorder %s20, 0
          %s168 = scalar_select %p167, %s20, 0
          %s169 = sadd.s32 %s168, %s166
          %s170 = smul.addr %s169, 8
          %s171 = scalar_lea.vmem %s0, %s170
        $region20: #{self_attention.3} parent=15 // pred_fallthru
          _
        // Predicated region
        $region21: #{self_attention.3} parent=15 // pred_check
          %p172 = pneg %p81
        $region22: #{self_attention.3} parent=15 // pred_check_branch
          %174 = sbr.rel (%p172) target = $region24
        $region23: #{self_attention.3} parent=15 // pred_region
          %p175 = scmp.lt.s32.totalorder %s19, 1
          %s176 = scalar_select %p175, %s19, 1
          %p177 = scmp.lt.s32.totalorder %s21, 0
          %s178 = scalar_select %p177, %s21, 0
          %s179 = sadd.s32 %s178, %s176
          %s180 = smul.addr %s179, 8
          %s181 = scalar_lea.vmem %s1, %s180
        $region24: #{self_attention.3} parent=15 // pred_fallthru
          _
        // Predicated region
        $region25: #{self_attention.3} parent=15 // pred_check
          %p182 = pneg %p109
        $region26: #{self_attention.3} parent=15 // pred_check_branch
          %184 = sbr.rel (%p182) target = $region28
        $region27: #{self_attention.3} parent=15 // pred_region
          %p185 = scmp.lt.s32.totalorder %s19, 1
          %s186 = scalar_select %p185, %s19, 1
          %p187 = scmp.lt.s32.totalorder %s21, 0
          %s188 = scalar_select %p187, %s21, 0
          %s189 = sadd.s32 %s188, %s186
          %s190 = smul.addr %s189, 8
          %s191 = scalar_lea.vmem %s2, %s190
        $region28: #{self_attention.3} parent=15 // pred_fallthru
          _
      $region16: #{self_attention.3} parent=5 // pred_fallthru
        _
      %p192 = scmp.le.s32.totalorder 1, %s12
      %p193 = scmp.lt.s32.totalorder %s12, 3
      %p194 = pnand %p192, %p193
      %p195 = pneg %p194
      // Predicated region
      $region29: #{self_attention.3} parent=5 // pred_check
        _
      $region30: #{self_attention.3} parent=5 // pred_check_branch
        %197 = sbr.rel (%p194) target = $region32
      $region31: #{self_attention.3} parent=5 // pred_region
        %s198 = ssub.s32 %s12, 1
        %p199 = scmp.lt.s32.totalorder %s22, 1
        %s200 = scalar_select %p199, %s22, 1
        %p201 = scmp.lt.s32.totalorder %s23, 0
        %s202 = scalar_select %p201, %s23, 0
        %s203 = sadd.s32 %s202, %s200
        %s204 = smul.addr %s203, 8
        %s205 = scalar_lea.vmem %s0, %s204
        %p206 = pneg %p59
        %p207 = pneg %p56
        %p208 = scmp.lt.s32.totalorder %s22, 1
        %s209 = scalar_select %p208, %s22, 1
        %p210 = scmp.lt.s32.totalorder %s24, 0
        %s211 = scalar_select %p210, %s24, 0
        %s212 = sadd.s32 %s211, %s209
        %s213 = smul.addr %s212, 8
        %s214 = scalar_lea.vmem %s1, %s213
        %p215 = pneg %p87
        %p216 = pneg %p84
        %p217 = scmp.lt.s32.totalorder %s22, 1
        %s218 = scalar_select %p217, %s22, 1
        %p219 = scmp.lt.s32.totalorder %s24, 0
        %s220 = scalar_select %p219, %s24, 0
        %s221 = sadd.s32 %s220, %s218
        %s222 = smul.addr %s221, 8
        %s223 = scalar_lea.vmem %s2, %s222
        %p224 = pneg %p115
        %p225 = pneg %p112
        %p226 = pneg %p143
        %p227 = pneg %p140
        %s228 = sand.u32 %s130, 1
        %s229 = scalar_lea.sflag [#allocation6], %s228
        %s230 = sand.u32 %s130, 1
        %s231 = smul.addr %s230, 8
        %s232 = scalar_lea.vmem [#allocation5], %s231
        %p233 = scmp.lt.s32.totalorder %s22, 1
        %s234 = scalar_select %p233, %s22, 1
        %p235 = scmp.lt.s32.totalorder %s23, 0
        %s236 = scalar_select %p235, %s23, 0
        %s237 = sadd.s32 %s236, %s234
        %s238 = smul.addr %s237, 8
        %s239 = scalar_lea.vmem %s0, %s238
        %p240 = scmp.lt.s32.totalorder %s22, 1
        %s241 = scalar_select %p240, %s22, 1
        %p242 = scmp.lt.s32.totalorder %s24, 0
        %s243 = scalar_select %p242, %s24, 0
        %s244 = sadd.s32 %s243, %s241
        %s245 = smul.addr %s244, 8
        %s246 = scalar_lea.vmem %s1, %s245
        %p247 = scmp.lt.s32.totalorder %s22, 1
        %s248 = scalar_select %p247, %s22, 1
        %p249 = scmp.lt.s32.totalorder %s24, 0
        %s250 = scalar_select %p249, %s24, 0
        %s251 = sadd.s32 %s250, %s248
        %s252 = smul.addr %s251, 8
        %s253 = scalar_lea.vmem %s2, %s252
        %p254 = scmp.eq.s32.totalorder %s24, 0
        // Predicated region
        $region33: #{self_attention.3} parent=31 // pred_check
          %p255 = pneg %p254
        $region34: #{self_attention.3} parent=31 // pred_check_branch
          %257 = sbr.rel (%p255) target = $region36
        $region35: #{self_attention.3} parent=31 // pred_region
          %vm258 = vcmask 7168
          %259 = vst.msk [vmem:[#allocation2] sm:$0xff] %vm258, -inf
          %260 = vst.msk [vmem:[#allocation3] sm:$0xff] %vm258, 0.0
          %vm261 = vcmask 261120
          %262 = vst.msk [vmem:[#allocation4] sm:$0xff] %vm261, 0.0
        $region36: #{self_attention.3} parent=31 // pred_fallthru
          _
        %v263 = vld [vmem:[%s239] sm:$0xff]
        %v264 = vld [vmem:[%s246] sm:$0xff]
        %v265 = vld [vmem:[%s253] sm:$0xff]
        %vm266 = vcmask 261120
        %v268 = vsel %vm266, %v263, 0
        %v271 = vsel %vm266, %v264, 0
        %273 = vmatprep.subr.mxu0 0.0
        %274 = vmatpush1.xpose.msra.mxu0 0.0
        %275 = vmatprep.subr.mxu0 0.0
        %276 = vmatpush1.xpose.msra.mxu0 0.0
        %277 = vmatprep.subr.mxu0 0.0
        %278 = vmatpush1.xpose.msra.mxu0 0.0
        %279 = vmatprep.subr.mxu0 0.0
        %280 = vmatpush1.xpose.msra.mxu0 0.0
        %281 = vmatprep.subr.mxu0 0.0
        %282 = vmatpush1.xpose.msra.mxu0 0.0
        %283 = vmatprep.subr.mxu0 0.0
        %284 = vmatpush1.xpose.msra.mxu0 0.0
        %285 = vmatprep.subr.mxu0 0.0
        %286 = vmatpush1.xpose.msra.mxu0 0.0
        %287 = vmatprep.subr.mxu0 0.0
        %288 = vmatpush1.xpose.msra.mxu0 0.0
        %289 = vmatprep.subr.mxu0 0.0
        %290 = vmatpush1.xpose.msra.mxu0 0.0
        %291 = vmatprep.subr.mxu0 0.0
        %292 = vmatpush1.xpose.msra.mxu0 0.0
        %293 = vmatprep.subr.mxu0 0.0
        %294 = vmatpush1.xpose.msra.mxu0 0.0
        %295 = vmatprep.subr.mxu0 0.0
        %296 = vmatpush1.xpose.msra.mxu0 0.0
        %297 = vmatprep.subr.mxu0 0.0
        %298 = vmatpush1.xpose.msra.mxu0 0.0
        %299 = vmatprep.subr.mxu0 0.0
        %300 = vmatpush1.xpose.msra.mxu0 0.0
        %301 = vmatprep.subr.mxu0 0.0
        %302 = vmatpush1.xpose.msra.mxu0 0.0
        %303 = vmatprep.subr.mxu0 0.0
        %304 = vmatpush1.xpose.msra.mxu0 %v271
        %305 = vmatprep.subr.mxu0 0.0
        %306 = vmatpush2.xpose.msra.mxu0 0.0
        %307 = vmatprep.subr.mxu0 0.0
        %308 = vmatpush2.xpose.msra.mxu0 0.0
        %309 = vmatprep.subr.mxu0 0.0
        %310 = vmatpush2.xpose.msra.mxu0 0.0
        %311 = vmatprep.subr.mxu0 0.0
        %312 = vmatpush2.xpose.msra.mxu0 0.0
        %313 = vmatprep.subr.mxu0 0.0
        %314 = vmatpush2.xpose.msra.mxu0 0.0
        %315 = vmatprep.subr.mxu0 0.0
        %316 = vmatpush2.xpose.msra.mxu0 0.0
        %317 = vmatprep.subr.mxu0 0.0
        %318 = vmatpush2.xpose.msra.mxu0 0.0
        %319 = vmatprep.subr.mxu0 0.0
        %320 = vmatpush2.xpose.msra.mxu0 0.0
        %321 = vmatprep.subr.mxu0 0.0
        %322 = vmatpush2.xpose.msra.mxu0 0.0
        %323 = vmatprep.subr.mxu0 0.0
        %324 = vmatpush2.xpose.msra.mxu0 0.0
        %325 = vmatprep.subr.mxu0 0.0
        %326 = vmatpush2.xpose.msra.mxu0 0.0
        %327 = vmatprep.subr.mxu0 0.0
        %328 = vmatpush2.xpose.msra.mxu0 0.0
        %329 = vmatprep.subr.mxu0 0.0
        %330 = vmatpush2.xpose.msra.mxu0 0.0
        %331 = vmatprep.subr.mxu0 0.0
        %332 = vmatpush2.xpose.msra.mxu0 0.0
        %333 = vmatprep.subr.mxu0 0.0
        %334 = vmatpush2.xpose.msra.mxu0 0.0
        %335 = vmatprep.subr.mxu0 0.0
        %336 = vmatpush2.xpose.msra.mxu0 0.0
        %337 = vmatprep.mubr.f32.mxu0 0.0
        %338 = vmatmul.mubr.f32.gmra.mxu0 %v268
        %v339 = vpop.f32.mrf.mxu0
        %v340 = vadd.f32 0.0, %v339
        %v341 = vpop.f32.mrf.mxu0
        %342 = vdwg.mxu0
        %v343 = vld [vmem:[#allocation2] sm:$0xff]
        %vm344 = vcmask 64512
        %v345 = vsel %vm344, %v340, -inf
        %346 = vmax.xlane.f32.xlu0 %v345
        %v347 = vpop.xlane.xlu0 %346
        %v348 = vmax.f32 %v343, %v347
        %v349 = vsub.f32 %v343, %v348
        %v350 = vmul.f32 %v349, 1.442695
        %v351 = vpow.pop %v350
        %353 = vset.pattern.permute.xlu0 0
        %354 = vperm.xlu0 %353, %v348
        %v355 = vpop.permute.xlu0 %354
        %v357 = vsub.f32 %v340, %v355
        %v358 = vmul.f32 %v357, 1.442695
        %v359 = vpow.pop %v358
        %v360 = vld [vmem:[#allocation3] sm:$0xff]
        %v361 = vmul.f32 %v351, %v360
        %v362 = vsel %vm344, %v359, 0.0
        %363 = vadd.xlane.f32.xlu0 %v362
        %v364 = vpop.xlane.xlu0 %363
        %v365 = vadd.f32 %v361, %v364
        %vm366 = vcmask 7168
        %367 = vst.msk [vmem:[#allocation3] sm:$0xff] %vm366, %v365
        %v369 = vsel %vm344, %v359, 0
        %371 = vmatprep.subr.mxu0 0.0
        %372 = vmatpush1.msra.mxu0 0.0
        %373 = vmatprep.subr.mxu0 0.0
        %374 = vmatpush1.msra.mxu0 0.0
        %375 = vmatprep.subr.mxu0 0.0
        %376 = vmatpush1.msra.mxu0 0.0
        %377 = vmatprep.subr.mxu0 0.0
        %378 = vmatpush1.msra.mxu0 0.0
        %379 = vmatprep.subr.mxu0 0.0
        %380 = vmatpush1.msra.mxu0 0.0
        %381 = vmatprep.subr.mxu0 0.0
        %382 = vmatpush1.msra.mxu0 0.0
        %383 = vmatprep.subr.mxu0 0.0
        %384 = vmatpush1.msra.mxu0 0.0
        %385 = vmatprep.subr.mxu0 0.0
        %386 = vmatpush1.msra.mxu0 0.0
        %387 = vmatprep.subr.mxu0 0.0
        %388 = vmatpush1.msra.mxu0 0.0
        %389 = vmatprep.subr.mxu0 0.0
        %390 = vmatpush1.msra.mxu0 0.0
        %391 = vmatprep.subr.mxu0 0.0
        %392 = vmatpush1.msra.mxu0 0.0
        %393 = vmatprep.subr.mxu0 0.0
        %394 = vmatpush1.msra.mxu0 0.0
        %395 = vmatprep.subr.mxu0 0.0
        %396 = vmatpush1.msra.mxu0 0.0
        %397 = vmatprep.subr.mxu0 0.0
        %398 = vmatpush1.msra.mxu0 0.0
        %399 = vmatprep.subr.mxu0 0.0
        %400 = vmatpush1.msra.mxu0 0.0
        %401 = vmatprep.subr.mxu0 0.0
        %402 = vmatpush1.msra.mxu0 %v265
        %403 = vmatprep.subr.mxu0 0.0
        %404 = vmatpush2.msra.mxu0 0.0
        %405 = vmatprep.subr.mxu0 0.0
        %406 = vmatpush2.msra.mxu0 0.0
        %407 = vmatprep.subr.mxu0 0.0
        %408 = vmatpush2.msra.mxu0 0.0
        %409 = vmatprep.subr.mxu0 0.0
        %410 = vmatpush2.msra.mxu0 0.0
        %411 = vmatprep.subr.mxu0 0.0
        %412 = vmatpush2.msra.mxu0 0.0
        %413 = vmatprep.subr.mxu0 0.0
        %414 = vmatpush2.msra.mxu0 0.0
        %415 = vmatprep.subr.mxu0 0.0
        %416 = vmatpush2.msra.mxu0 0.0
        %417 = vmatprep.subr.mxu0 0.0
        %418 = vmatpush2.msra.mxu0 0.0
        %419 = vmatprep.subr.mxu0 0.0
        %420 = vmatpush2.msra.mxu0 0.0
        %421 = vmatprep.subr.mxu0 0.0
        %422 = vmatpush2.msra.mxu0 0.0
        %423 = vmatprep.subr.mxu0 0.0
        %424 = vmatpush2.msra.mxu0 0.0
        %425 = vmatprep.subr.mxu0 0.0
        %426 = vmatpush2.msra.mxu0 0.0
        %427 = vmatprep.subr.mxu0 0.0
        %428 = vmatpush2.msra.mxu0 0.0
        %429 = vmatprep.subr.mxu0 0.0
        %430 = vmatpush2.msra.mxu0 0.0
        %431 = vmatprep.subr.mxu0 0.0
        %432 = vmatpush2.msra.mxu0 0.0
        %433 = vmatprep.subr.mxu0 0.0
        %434 = vmatpush2.msra.mxu0 0.0
        %435 = vmatprep.mubr.f32.mxu0 0.0
        %436 = vmatmul.mubr.f32.gmra.mxu0 %v369
        %v437 = vpop.f32.mrf.mxu0
        %v438 = vadd.f32 0.0, %v437
        %v439 = vpop.f32.mrf.mxu0
        %440 = vdwg.mxu0
        %v441 = vld [vmem:[#allocation4] sm:$0xff]
        %443 = vset.pattern.permute.xlu0 0
        %444 = vperm.xlu0 %443, %v351
        %v445 = vpop.permute.xlu0 %444
        %v447 = vmul.f32 %v445, %v441
        %v448 = vadd.f32 %v447, %v438
        %449 = vst.msk [vmem:[#allocation4] sm:$0xff] %vm266, %v448
        %450 = vst.msk [vmem:[#allocation2] sm:$0xff] %vm366, %v348
        // Predicated region
        $region37: #{self_attention.3} parent=31 // pred_check
          %p451 = pneg %p254
        $region38: #{self_attention.3} parent=31 // pred_check_branch
          %453 = sbr.rel (%p451) target = $region40
        $region39: #{self_attention.3} parent=31 // pred_region
          %v454 = vld [vmem:[#allocation3] sm:$0xff]
          %v455 = vrcp.pop %v454
          %v456 = vld [vmem:[#allocation4] sm:$0xff]
          %458 = vset.pattern.permute.xlu0 0
          %459 = vperm.xlu0 %458, %v455
          %v460 = vpop.permute.xlu0 %459
          %v462 = vmul.f32 %v456, %v460
          %463 = vst.msk [vmem:[%s232] sm:$0xff] %vm266, %v462
        $region40: #{self_attention.3} parent=31 // pred_fallthru
          _
        %s464 = sand.u32 %s130, 1
        %s465 = scalar_lea.sflag [#allocation6], %s464
        %s466 = sand.u32 %s130, 1
        %s467 = smul.addr %s466, 8
        %s468 = scalar_lea.vmem [#allocation5], %s467
        // Predicated region
        $region41: #{self_attention.3} parent=31 // pred_check
          %p469 = pneg %p140
        $region42: #{self_attention.3} parent=31 // pred_check_branch
          %471 = sbr.rel (%p469) target = $region44
        $region43: #{self_attention.3} parent=31 // pred_region
          %s473 = ssub.s32 128, 128
          %474 = vsyncadd %s465, %s473
          %s475 = sadd.s32 %s23, %s22
          %s476 = smul.addr %s475, 128
          %s477 = scalar_lea.hbm %s3, %s476
          %s479 = sshll.u32 %s468, 4
          %s480 = int_to_ptr.vmem [resolvable:$true] %s479
          %482 = dma.vmem_to_hbm [thread:$0]  %s480, 128, %s477, %s465
        $region44: #{self_attention.3} parent=31 // pred_fallthru
          _
      $region32: #{self_attention.3} parent=5 // pred_fallthru
        _
      %p483 = scmp.le.s32.totalorder 2, %s12
      // Predicated region
      $region45: #{self_attention.3} parent=5 // pred_check
        %p484 = pneg %p483
      $region46: #{self_attention.3} parent=5 // pred_check_branch
        %486 = sbr.rel (%p484) target = $region48
      $region47: #{self_attention.3} parent=5 // pred_region
        %s487 = ssub.s32 %s12, 2
        // Predicated region
        $region49: #{self_attention.3} parent=47 // pred_check
          %p488 = pneg %p146
        $region50: #{self_attention.3} parent=47 // pred_check_branch
          %490 = sbr.rel (%p488) target = $region52
        $region51: #{self_attention.3} parent=47 // pred_region
          %s491 = sand.u32 %s131, 1
          %s492 = scalar_lea.sflag [#allocation6], %s491
          %s493 = sand.u32 %s131, 1
          %s494 = smul.addr %s493, 8
          %s495 = scalar_lea.vmem [#allocation5], %s494
          %496 = dma.done %s492, 128
        $region52: #{self_attention.3} parent=47 // pred_fallthru
          _
      $region48: #{self_attention.3} parent=5 // pred_fallthru
        _
    $region6: #{self_attention.3} parent=1 // loop_footer
      %s16 = sadd.s32 1, %s12
    $region7: #{self_attention.3} parent=1 // loop_footer_branch
      %11 = sbr.rel target = $region3
    $region8: #{self_attention.3} parent=1 // loop_exit
      _
    %497 = vsyncpa [#allocation6], 1
    %s498 = scalar_lea.sflag [#allocation6], 1
    %499 = vsyncpa %s498, 1

</llo_original>
